<compile_context>
chip_gen: v7x
topology: tpu7x:2x2x1
jax: 0.10.0
libtpu: 0.0.40
codegen_flags: <defaults>
</compile_context>

<pallas_src>
import math

import jax
import jax.numpy as jnp
from jax.experimental import pallas as pl
from jax.experimental.pallas import tpu as pltpu


def token_embed_kernel(x_ref, w_ref, o_ref):
    # x_ref: (1, L, C)   one batch element (resident across the inner D loop)
    # w_ref: (3C, TD)    fused tap-major weight tile [w_prev; w_curr; w_next]
    # o_ref: (1, L, TD)  output tile (lane-dense: TD is a multiple of 128)
    x = x_ref[0]                                    # (L, C)
    L = x.shape[0]

    # Circular shifts along the sequence axis (XLU sublane rotates, no copies):
    #   x_prev[t] = x[(t-1) mod L],  x_next[t] = x[(t+1) mod L]
    x_prev = pltpu.roll(x, shift=1, axis=0)
    x_next = pltpu.roll(x, shift=L - 1, axis=0)     # == roll by -1
    x3 = jnp.concatenate([x_prev, x, x_next], axis=-1)   # (L, 3C)

    # Full f32 precision for f32 inputs (review: default bf16-pass precision
    # can drift for larger c_in); bf16 inputs use the native MXU path.
    prec = jax.lax.Precision.HIGHEST if x3.dtype == jnp.float32 else None
    acc = jnp.dot(x3, w_ref[...], preferred_element_type=jnp.float32,
                  precision=prec)
    o_ref[0] = acc.astype(o_ref.dtype)


def _pick_td(d_model):
    """Largest multiple-of-128 tile dividing d_model: lane-dense stores and a
    bounded per-step VMEM footprint (v7x-friendly).  Falls back to full D."""
    for td in (1024, 512, 256, 128):
        if d_model % td == 0:
            return td
    return d_model


def token_embedding(x, w3, *, io_dtype=None):
    """x: (B, L, c_in); w3: (3, c_in, d_model) tap-major -> (B, L, d_model)."""
    B, L, C = x.shape
    taps, C2, D = w3.shape
    assert taps == 3 and C2 == C

    # Fuse the 3 taps into one (3C, D) matrix, rows ordered [prev, curr, next].
    w_fused = w3.reshape(3 * C, D)
    if io_dtype is not None:                 # bf16 I/O: halves HBM traffic
        x = x.astype(io_dtype)
        w_fused = w_fused.astype(io_dtype)

    TD = _pick_td(D)
    num_d_tiles = D // TD

    return pl.pallas_call(
        token_embed_kernel,
        out_shape=jax.ShapeDtypeStruct((B, L, D), x.dtype),
        grid_spec=pltpu.PrefetchScalarGridSpec(
            num_scalar_prefetch=0,
            grid=(B, num_d_tiles),           # inner d loop: x block stays put
            in_specs=[
                pl.BlockSpec((1, L, C), lambda b, d: (b, 0, 0)),
                pl.BlockSpec((3 * C, TD), lambda b, d: (0, d)),
            ],
            out_specs=pl.BlockSpec((1, L, TD), lambda b, d: (b, 0, d)),
        ),
        compiler_params=pltpu.CompilerParams(
            dimension_semantics=("parallel", "parallel")),
    )(x, w_fused)


def make_weight(key, c_in, d_model):
    """Deterministic Kaiming-normal (fan_in, leaky_relu) init, matching
    nn.init.kaiming_normal_(conv.weight, mode='fan_in', nonlinearity='leaky_relu')."""
    fan_in = c_in * 3                        # in_channels * kernel_size
    gain = math.sqrt(2.0)                    # leaky_relu gain with default a=0
    std = gain / math.sqrt(fan_in)
    # PyTorch Conv1d weight layout: (out_channels, in_channels, kernel_size)
    w_pt = jax.random.normal(key, (d_model, c_in, 3), dtype=jnp.float32) * std
    # Kernel-friendly layout: (tap, in_channel, out_channel)
    w3 = jnp.transpose(w_pt, (2, 1, 0))
    return w_pt, w3


def reference(x, w_pt):
    """Independent JAX reference: circular pad + valid conv in NCL layout."""
    x_ncl = jnp.transpose(x, (0, 2, 1))                      # (B, C, L)
    x_pad = jnp.pad(x_ncl, ((0, 0), (0, 0), (1, 1)), mode="wrap")
    y = jax.lax.conv_general_dilated(
        x_pad, w_pt, window_strides=(1,), padding="VALID",
        dimension_numbers=("NCH", "OIH", "NCH"),
        precision=jax.lax.Precision.HIGHEST)
    return jnp.transpose(y, (0, 2, 1))                       # (B, L, D)


if __name__ == "__main__":
    B, L, c_in, d_model = 2, 16, 8, 128      # d_model multiple of 128 -> lane-dense stores
    key = jax.random.PRNGKey(0)
    kx, kw = jax.random.split(key)

    x = jax.random.normal(kx, (B, L, c_in), dtype=jnp.float32)
    w_pt, w3 = make_weight(kw, c_in, d_model)

    ref = jax.block_until_ready(reference(x, w_pt))

    # f32 path (bit-faithful to the PyTorch f32 conv semantics).
    out = jax.block_until_ready(token_embedding(x, w3))
    assert out.shape == (B, L, d_model)
    assert jnp.allclose(out, ref, atol=1e-4, rtol=1e-4)

    # bf16 I/O path (mem-bound op: half the HBM bytes); loose tolerance.
    out_bf16 = jax.block_until_ready(token_embedding(x, w3, io_dtype=jnp.bfloat16))
    assert out_bf16.dtype == jnp.bfloat16
    assert jnp.allclose(out_bf16.astype(jnp.float32), ref, atol=1e-1, rtol=1e-1)

    print("KERNEL_OK")
</pallas_src>

<mosaic_0001>
module attributes {stable_mosaic.version = 11 : i64} {
  func.func @token_embed_kernel(%arg0: i32, %arg1: i32, %arg2: memref<1x16x8xf32, #tpu.memory_space<vmem>>, %arg3: memref<24x128xf32, #tpu.memory_space<vmem>>, %arg4: memref<1x16x128xf32, #tpu.memory_space<vmem>>) attributes {dimension_semantics = [#tpu.dimension_semantics<parallel>, #tpu.dimension_semantics<parallel>], iteration_bounds = array<i64: 2, 1>, scalar_prefetch = 0 : i64, scratch_operands = 0 : i64, tpu.core_type = #tpu.core_type<tc>, window_params = [{transform_indices = @transform_0, window_bounds = array<i64: 1, 16, 8>}, {transform_indices = @transform_1, window_bounds = array<i64: 24, 128>}, {transform_indices = @transform_2, window_bounds = array<i64: 1, 16, 128>}]} {
    %c0 = arith.constant 0 : index
    %c0_0 = arith.constant 0 : index
    %c0_1 = arith.constant 0 : index
    %0 = vector.load %arg2[%c0, %c0_0, %c0_1] : memref<1x16x8xf32, #tpu.memory_space<vmem>>, vector<1x16x8xf32>
    %1 = vector.shape_cast %0 : vector<1x16x8xf32> to vector<16x8xf32>
    %c1_i32 = arith.constant 1 : i32
    %2 = tpu.dynamic_rotate %1 by %c1_i32 dim 0 : vector<16x8xf32>, i32 -> vector<16x8xf32>
    %c15_i32 = arith.constant 15 : i32
    %3 = tpu.dynamic_rotate %1 by %c15_i32 dim 0 : vector<16x8xf32>, i32 -> vector<16x8xf32>
    %4 = tpu.concatenate %2, %1, %3 in 1 : vector<16x8xf32>, vector<16x8xf32>, vector<16x8xf32> -> vector<16x24xf32>
    %c0_2 = arith.constant 0 : index
    %c0_3 = arith.constant 0 : index
    %5 = vector.load %arg3[%c0_2, %c0_3] : memref<24x128xf32, #tpu.memory_space<vmem>>, vector<24x128xf32>
    %cst = arith.constant dense<0.000000e+00> : vector<16x128xf32>
    %6 = tpu.matmul %4, %5, %cst {dimension_numbers = #tpu.dot_dimension_numbers<[1], [0], [0], [1], [0, 0, 1, 1], [], []>, precision = #tpu.contract_precision<fp32>} : vector<16x24xf32>, vector<24x128xf32>, vector<16x128xf32> -> vector<16x128xf32>
    %c0_4 = arith.constant 0 : index
    %c0_5 = arith.constant 0 : index
    %c0_6 = arith.constant 0 : index
    %7 = vector.load %arg4[%c0_4, %c0_5, %c0_6] : memref<1x16x128xf32, #tpu.memory_space<vmem>>, vector<1x16x128xf32>
    %8 = vector.shape_cast %7 : vector<1x16x128xf32> to vector<16x128xf32>
    %9 = vector.shape_cast %6 : vector<16x128xf32> to vector<1x16x128xf32>
    tpu.vector_store %arg4[%c0_4, %c0_5, %c0_6], %9 {strides = array<i32>} : memref<1x16x128xf32, #tpu.memory_space<vmem>>, vector<1x16x128xf32>,
    return
  }
  func.func @transform_0(%arg0: i32, %arg1: i32) -> (i32, i32, i32) {
    %c0_i32 = arith.constant 0 : i32
    %c0_i32_0 = arith.constant 0 : i32
    %c0_i32_1 = arith.constant 0 : i32
    return %arg0, %c0_i32, %c0_i32_0 : i32, i32, i32
  }
  func.func @transform_1(%arg0: i32, %arg1: i32) -> (i32, i32) {
    %c0_i32 = arith.constant 0 : i32
    %c0_i32_0 = arith.constant 0 : i32
    return %c0_i32, %arg1 : i32, i32
  }
  func.func @transform_2(%arg0: i32, %arg1: i32) -> (i32, i32, i32) {
    %c0_i32 = arith.constant 0 : i32
    %c0_i32_0 = arith.constant 0 : i32
    return %arg0, %c0_i32, %arg1 : i32, i32, i32
  }
}

</mosaic_0001>

<llo_original>
// kernel: tpu_custom_call.1
$region0: #{tpu_custom_call.1}
  #allocation0 [shape = 'u32[]', space=smem, size = 0x4, offset = 0x4, fixed_abs, tag = 'smem constant byte address 0x4 - core index']
  #allocation1 [shape = 'u32[144,128]{1,0:T(1,128)}', space=vmem, size = 0x12000, scoped, tag = 'internal scratch']
  %s0 = inlined_call_operand.vmem [shape: f32[2,16,8], index: 0, kind: input, shape index: {}]
  %s1 = inlined_call_operand.vmem [shape: f32[24,128], index: 1, kind: input, shape index: {}]
  %s2 = inlined_call_operand.hbm [shape: f32[2,16,128], index: 2, kind: output, shape index: {}]
  %s3 = sld [smem:[#allocation0]]
  $region41: #{tpu_custom_call.1} parent=0
    _
  %s5 = ssub.s32 1, %s3
  %s6 = scalar_select 0, %s5, %s3
  $region1: #{tpu_custom_call.1} parent=0
    #allocation2 [shape = 'u8[16384]{0}', space=vmem, size = 0x4000, scoped, tag = 'output window, operand 0']
    #allocation3 [shape = 's32[2]{0}', space=sflag, size = 0x8, scoped, tag = 'scoped memory for tpu_custom_call.1']
    %7 = vsyncpa [#allocation3], 0
    %s8 = scalar_lea.sflag [#allocation3], 1
    %9 = vsyncpa %s8, 0
    loop: start=0, step=1, limit=4
    $region2: #{tpu_custom_call.1} parent=1 // loop_pre_header
      _
    $region3: #{tpu_custom_call.1} parent=1 // loop_header
      %s11 = sphi 0, %s15
      %p12 = scmp.ge.s32.totalorder %s11, 4
      %s18 = sphi 0, %s30
      %s19 = sphi 0, %s26
      %s20 = sphi 0, %s18
      %s21 = sphi 0, %s19
      %s22 = sphi 0, %s20
      %s23 = sphi 0, %s21
      %s33 = sphi 0, %s35
      %s36 = sphi 0, %s33
      %s37 = sphi 0, %s36
      %s53 = sphi 0, %s37
      %s59 = sphi 0, %s61
      %s62 = sphi 0, %s59
      %s63 = sphi 0, %s62
      %s79 = sphi 0, %s63
      %s87 = sphi 0, %s89
      %s90 = sphi 0, %s87
      %s91 = sphi 0, %s90
      %s107 = sphi 0, %s91
    $region4: #{tpu_custom_call.1} parent=1 // loop_header_branch
      %14 = sbr.rel (%p12) target = $region8
    $region5: #{tpu_custom_call.1} parent=1 // loop_body
      %s16 = ssub.s32 %s11, 1
      %s17 = ssub.s32 %s11, 2
      %s24 = sadd.s32 1, %s19
      %p25 = scmp.ge.s32.totalorder %s24, 1
      %s26 = scalar_select %p25, 0, %s24
      %s27 = sadd.s32 1, %s18
      %s28 = scalar_select %p25, %s27, %s18
      %p29 = scmp.ge.s32.totalorder %s28, 2
      %s30 = scalar_select %p29, 0, %s28
      %s31 = ssub.s32 %s18, %s30
      %p32 = scmp.eq.s32.totalorder %s31, 0
      %s34 = sadd.s32 %s33, 1
      %s35 = scalar_select %p32, %s33, %s34
      %p38 = pneg %p32
      %p39 = scmp.eq.s32.totalorder %s11, 1
      %p40 = por %p38, %p39
      %p41 = scmp.ne.s32.totalorder %s33, %s36
      %p42 = scmp.eq.s32.totalorder %s11, 0
      %p43 = por %p41, %p42
      %p44 = scmp.ne.s32.totalorder %s33, %s36
      %p45 = scmp.eq.s32.totalorder %s16, 1
      %p46 = por %p44, %p45
      %p47 = scmp.ne.s32.totalorder %s36, %s37
      %p48 = scmp.eq.s32.totalorder %s16, 0
      %p49 = por %p47, %p48
      %p50 = scmp.ne.s32.totalorder %s36, %s37
      %p51 = scmp.eq.s32.totalorder %s17, 1
      %p52 = por %p50, %p51
      %p54 = scmp.ne.s32.totalorder %s37, %s53
      %p55 = scmp.eq.s32.totalorder %s17, 0
      %p56 = por %p54, %p55
      %s57 = ssub.s32 %s19, %s26
      %p58 = scmp.eq.s32.totalorder %s57, 0
      %s60 = sadd.s32 %s59, 1
      %s61 = scalar_select %p58, %s59, %s60
      %p64 = pneg %p58
      %p65 = scmp.eq.s32.totalorder %s11, 1
      %p66 = por %p64, %p65
      %p67 = scmp.ne.s32.totalorder %s59, %s62
      %p68 = scmp.eq.s32.totalorder %s11, 0
      %p69 = por %p67, %p68
      %p70 = scmp.ne.s32.totalorder %s59, %s62
      %p71 = scmp.eq.s32.totalorder %s16, 1
      %p72 = por %p70, %p71
      %p73 = scmp.ne.s32.totalorder %s62, %s63
      %p74 = scmp.eq.s32.totalorder %s16, 0
      %p75 = por %p73, %p74
      %p76 = scmp.ne.s32.totalorder %s62, %s63
      %p77 = scmp.eq.s32.totalorder %s17, 1
      %p78 = por %p76, %p77
      %p80 = scmp.ne.s32.totalorder %s63, %s79
      %p81 = scmp.eq.s32.totalorder %s17, 0
      %p82 = por %p80, %p81
      %s83 = ssub.s32 %s18, %s30
      %s84 = ssub.s32 %s19, %s26
      %s85 = sor.u32 %s83, %s84
      %p86 = scmp.eq.s32.totalorder %s85, 0
      %s88 = sadd.s32 %s87, 1
      %s89 = scalar_select %p86, %s87, %s88
      %p92 = pneg %p86
      %p93 = scmp.eq.s32.totalorder %s11, 1
      %p94 = por %p92, %p93
      %p95 = scmp.ne.s32.totalorder %s87, %s90
      %p96 = scmp.eq.s32.totalorder %s11, 0
      %p97 = por %p95, %p96
      %p98 = scmp.ne.s32.totalorder %s87, %s90
      %p99 = scmp.eq.s32.totalorder %s16, 1
      %p100 = por %p98, %p99
      %p101 = scmp.ne.s32.totalorder %s90, %s91
      %p102 = scmp.eq.s32.totalorder %s16, 0
      %p103 = por %p101, %p102
      %p104 = scmp.ne.s32.totalorder %s90, %s91
      %p105 = scmp.eq.s32.totalorder %s17, 1
      %p106 = por %p104, %p105
      %p108 = scmp.ne.s32.totalorder %s91, %s107
      %p109 = scmp.eq.s32.totalorder %s17, 0
      %p110 = por %p108, %p109
      %p111 = scmp.le.s32.totalorder 1, %s11
      %p112 = scmp.lt.s32.totalorder %s11, 3
      %p113 = pnand %p111, %p112
      %p114 = pneg %p113
      // Predicated region
      $region9: #{tpu_custom_call.1} parent=5 // pred_check
        _
      $region10: #{tpu_custom_call.1} parent=5 // pred_check_branch
        %116 = sbr.rel (%p113) target = $region12
      $region11: #{tpu_custom_call.1} parent=5 // pred_region
        %s117 = ssub.s32 %s11, 1
        // Predicated region
        $region13: #{tpu_custom_call.1} parent=11 // pred_check
          %p118 = pneg %p75
        $region14: #{tpu_custom_call.1} parent=11 // pred_check_branch
          %120 = sbr.rel (%p118) target = $region16
        $region15: #{tpu_custom_call.1} parent=11 // pred_region
          %p121 = scmp.lt.s32.totalorder %s21, 0
          %s122 = scalar_select %p121, %s21, 0
          %s123 = smul.addr %s122, 8
          %s124 = scalar_lea.vmem %s1, %s123
        $region16: #{tpu_custom_call.1} parent=11 // pred_fallthru
          _
      $region12: #{tpu_custom_call.1} parent=5 // pred_fallthru
        _
      %p125 = scmp.lt.s32.totalorder %s11, 2
      // Predicated region
      $region17: #{tpu_custom_call.1} parent=5 // pred_check
        %p126 = pneg %p125
      $region18: #{tpu_custom_call.1} parent=5 // pred_check_branch
        %128 = sbr.rel (%p126) target = $region20
      $region19: #{tpu_custom_call.1} parent=5 // pred_region
        // Predicated region
        $region21: #{tpu_custom_call.1} parent=19 // pred_check
          %p129 = pneg %p43
        $region22: #{tpu_custom_call.1} parent=19 // pred_check_branch
          %131 = sbr.rel (%p129) target = $region24
        $region23: #{tpu_custom_call.1} parent=19 // pred_region
          %p132 = scmp.lt.s32.totalorder %s18, 1
          %s133 = scalar_select %p132, %s18, 1
          %s134 = smul.addr %s133, 2
          %s135 = smul.addr %s134, 8
          %s136 = scalar_lea.vmem %s0, %s135
        $region24: #{tpu_custom_call.1} parent=19 // pred_fallthru
          _
      $region20: #{tpu_custom_call.1} parent=5 // pred_fallthru
        _
      %p137 = scmp.le.s32.totalorder 1, %s11
      %p138 = scmp.lt.s32.totalorder %s11, 3
      %p139 = pnand %p137, %p138
      %p140 = pneg %p139
      // Predicated region
      $region25: #{tpu_custom_call.1} parent=5 // pred_check
        _
      $region26: #{tpu_custom_call.1} parent=5 // pred_check_branch
        %142 = sbr.rel (%p139) target = $region28
      $region27: #{tpu_custom_call.1} parent=5 // pred_region
        %s143 = ssub.s32 %s11, 1
        %p144 = scmp.lt.s32.totalorder %s20, 1
        %s145 = scalar_select %p144, %s20, 1
        %s146 = smul.addr %s145, 2
        %s147 = smul.addr %s146, 8
        %s148 = scalar_lea.vmem %s0, %s147
        %p149 = pneg %p49
        %p150 = pneg %p46
        %p151 = scmp.lt.s32.totalorder %s21, 0
        %s152 = scalar_select %p151, %s21, 0
        %s153 = smul.addr %s152, 8
        %s154 = scalar_lea.vmem %s1, %s153
        %p155 = pneg %p75
        %p156 = pneg %p72
        %p157 = pneg %p103
        %p158 = pneg %p100
        %s159 = sand.u32 %s90, 1
        %s160 = scalar_lea.sflag [#allocation3], %s159
        %s161 = sand.u32 %s90, 1
        %s162 = smul.addr %s161, 16
        %s163 = scalar_lea.vmem [#allocation2], %s162
        %p164 = scmp.lt.s32.totalorder %s20, 1
        %s165 = scalar_select %p164, %s20, 1
        %s166 = smul.addr %s165, 2
        %s167 = smul.addr %s166, 8
        %s168 = scalar_lea.vmem %s0, %s167
        %p169 = scmp.lt.s32.totalorder %s21, 0
        %s170 = scalar_select %p169, %s21, 0
        %s171 = smul.addr %s170, 8
        %s172 = scalar_lea.vmem %s1, %s171
        %v173 = vld [vmem:[%s168] sm:$0xff]
        %v174 = vld [vmem:[%s168 + $0x8] sm:$0xff]
        %v175 = vrot.slane %v173, 7
        %v176 = vrot.slane %v174, 7
        %v177 = vlaneseq
        %v178 = vshrl.u32 %v177, 7
        %vm179 = vcmp.lt.s32.totalorder %v178, 1
        %v180 = vsel %vm179, %v175, %v176
        %v181 = vsel %vm179, %v176, %v175
        %v182 = vrot.slane %v173, 1
        %v183 = vrot.slane %v174, 1
        %vm184 = vcmp.lt.s32.totalorder %v178, 7
        %v185 = vsel %vm184, %v182, %v183
        %v186 = vsel %vm184, %v183, %v182
        %189 = vrot.lane.b32.xlu0 %v173, 8
        %v190 = vpop.permute.xlu0 %189
        %191 = vrot.lane.b32.xlu0 %v174, 8
        %v192 = vpop.permute.xlu0 %191
        %197 = vrot.lane.b32.xlu0 %v185, 16
        %v198 = vpop.permute.xlu0 %197
        %199 = vrot.lane.b32.xlu0 %v186, 16
        %v200 = vpop.permute.xlu0 %199
        %vm203 = vcmask 64512
        %v204 = vsel %vm203, %v181, %v190
        %v205 = vsel %vm203, %v180, %v192
        %vm206 = vcmask 130048
        %v207 = vsel %vm206, %v204, %v198
        %v208 = vsel %vm206, %v205, %v200
        %v209 = vld [vmem:[%s172] sm:$0xff]
        %v210 = vld [vmem:[%s172 + $0x8] sm:$0xff]
        %v211 = vld [vmem:[%s172 + $0x10] sm:$0xff]
        %vm212 = vcmask 195584
        %v214 = vsel %vm212, %v207, 0
        %v217 = vsel %vm212, %v208, 0
        %219 = vmatprep.subr.mxu0 0.0
        %v220 = vand.u32 %v209, 4294901760
        %221 = vmatpush1.msra.mxu0 %v220
        %222 = vmatprep.subr.mxu0 0.0
        %v223 = vand.u32 %v210, 4294901760
        %224 = vmatpush1.msra.mxu0 %v223
        %225 = vmatprep.subr.mxu0 0.0
        %v226 = vand.u32 %v211, 4294901760
        %227 = vmatpush1.msra.mxu0 %v226
        %228 = vmatprep.subr.mxu0 0.0
        %229 = vmatpush1.msra.mxu0 0.0
        %230 = vmatprep.subr.mxu0 0.0
        %231 = vmatpush1.msra.mxu0 0.0
        %232 = vmatprep.subr.mxu0 0.0
        %233 = vmatpush1.msra.mxu0 0.0
        %234 = vmatprep.subr.mxu0 0.0
        %235 = vmatpush1.msra.mxu0 0.0
        %236 = vmatprep.subr.mxu0 0.0
        %237 = vmatpush1.msra.mxu0 0.0
        %238 = vmatprep.subr.mxu0 0.0
        %239 = vmatpush1.msra.mxu0 0.0
        %240 = vmatprep.subr.mxu0 0.0
        %241 = vmatpush1.msra.mxu0 0.0
        %242 = vmatprep.subr.mxu0 0.0
        %243 = vmatpush1.msra.mxu0 0.0
        %244 = vmatprep.subr.mxu0 0.0
        %245 = vmatpush1.msra.mxu0 0.0
        %246 = vmatprep.subr.mxu0 0.0
        %247 = vmatpush1.msra.mxu0 0.0
        %248 = vmatprep.subr.mxu0 0.0
        %249 = vmatpush1.msra.mxu0 0.0
        %250 = vmatprep.subr.mxu0 0.0
        %251 = vmatpush1.msra.mxu0 0.0
        %252 = vmatprep.subr.mxu0 0.0
        %253 = vmatpush1.msra.mxu0 0.0
        %254 = vmatprep.subr.mxu0 0.0
        %255 = vmatpush1.msra.mxu0 0.0
        %256 = vmatprep.subr.mxu0 0.0
        %257 = vmatpush1.msra.mxu0 0.0
        %258 = vmatprep.subr.mxu0 0.0
        %259 = vmatpush1.msra.mxu0 0.0
        %260 = vmatprep.subr.mxu0 0.0
        %261 = vmatpush1.msra.mxu0 0.0
        %262 = vmatprep.subr.mxu0 0.0
        %263 = vmatpush1.msra.mxu0 0.0
        %264 = vmatprep.subr.mxu0 0.0
        %265 = vmatpush1.msra.mxu0 0.0
        %266 = vmatprep.subr.mxu0 0.0
        %267 = vmatpush1.msra.mxu0 0.0
        %268 = vmatprep.subr.mxu0 0.0
        %269 = vmatpush1.msra.mxu0 0.0
        %270 = vmatprep.subr.mxu0 0.0
        %271 = vmatpush1.msra.mxu0 0.0
        %272 = vmatprep.subr.mxu0 0.0
        %273 = vmatpush1.msra.mxu0 0.0
        %274 = vmatprep.subr.mxu0 0.0
        %275 = vmatpush1.msra.mxu0 0.0
        %276 = vmatprep.subr.mxu0 0.0
        %277 = vmatpush1.msra.mxu0 0.0
        %278 = vmatprep.subr.mxu0 0.0
        %279 = vmatpush1.msra.mxu0 0.0
        %280 = vmatprep.subr.mxu0 0.0
        %281 = vmatpush1.msra.mxu0 0.0
        %282 = vmatprep.subr.mxu0 0.0
        %283 = vmatpush1.msra.mxu0 0.0
        %284 = vmatprep.subr.mxu0 0.0
        %285 = vmatpush1.msra.mxu0 0.0
        %286 = vmatprep.mubr.f32.mxu0 0.0
        %v287 = vand.u32 %v214, 4294901760
        %v288 = vsub.f32 %v214, %v287
        %v289 = vand.u32 %v288, 4294901760
        %v290 = vsub.f32 %v288, %v289
        %v291 = vand.u32 %v290, 4294901760
        %292 = vmatmul.mubr.f32.gmra.mrb[0].mxu0 %v291
        %v293 = vpop.f32.mrb[0].mxu0
        %v294 = vadd.f32 0.0, %v293
        %v295 = vpop.f32.mrb[0].mxu0
        %296 = vmatprep.mubr.f32.mxu0 0.0
        %v297 = vand.u32 %v217, 4294901760
        %v298 = vsub.f32 %v217, %v297
        %v299 = vand.u32 %v298, 4294901760
        %v300 = vsub.f32 %v298, %v299
        %v301 = vand.u32 %v300, 4294901760
        %302 = vmatmul.mubr.f32.gmra.mrb[0].mxu0 %v301
        %v303 = vpop.f32.mrb[0].mxu0
        %v304 = vadd.f32 0.0, %v303
        %v305 = vpop.f32.mrb[0].mxu0
        %306 = vdwg.mxu0
        %307 = vmatprep.subr.mxu0 0.0
        %v308 = vand.u32 %v209, 4294901760
        %v309 = vsub.f32 %v209, %v308
        %v310 = vand.u32 %v309, 4294901760
        %v311 = vsub.f32 %v309, %v310
        %v312 = vand.u32 %v311, 4294901760
        %313 = vmatpush1.msra.mxu0 %v312
        %314 = vmatprep.subr.mxu0 0.0
        %v315 = vand.u32 %v210, 4294901760
        %v316 = vsub.f32 %v210, %v315
        %v317 = vand.u32 %v316, 4294901760
        %v318 = vsub.f32 %v316, %v317
        %v319 = vand.u32 %v318, 4294901760
        %320 = vmatpush1.msra.mxu0 %v319
        %321 = vmatprep.subr.mxu0 0.0
        %v322 = vand.u32 %v211, 4294901760
        %v323 = vsub.f32 %v211, %v322
        %v324 = vand.u32 %v323, 4294901760
        %v325 = vsub.f32 %v323, %v324
        %v326 = vand.u32 %v325, 4294901760
        %327 = vmatpush1.msra.mxu0 %v326
        %328 = vmatprep.subr.mxu0 0.0
        %329 = vmatpush1.msra.mxu0 0.0
        %330 = vmatprep.subr.mxu0 0.0
        %331 = vmatpush1.msra.mxu0 0.0
        %332 = vmatprep.subr.mxu0 0.0
        %333 = vmatpush1.msra.mxu0 0.0
        %334 = vmatprep.subr.mxu0 0.0
        %335 = vmatpush1.msra.mxu0 0.0
        %336 = vmatprep.subr.mxu0 0.0
        %337 = vmatpush1.msra.mxu0 0.0
        %338 = vmatprep.subr.mxu0 0.0
        %339 = vmatpush1.msra.mxu0 0.0
        %340 = vmatprep.subr.mxu0 0.0
        %341 = vmatpush1.msra.mxu0 0.0
        %342 = vmatprep.subr.mxu0 0.0
        %343 = vmatpush1.msra.mxu0 0.0
        %344 = vmatprep.subr.mxu0 0.0
        %345 = vmatpush1.msra.mxu0 0.0
        %346 = vmatprep.subr.mxu0 0.0
        %347 = vmatpush1.msra.mxu0 0.0
        %348 = vmatprep.subr.mxu0 0.0
        %349 = vmatpush1.msra.mxu0 0.0
        %350 = vmatprep.subr.mxu0 0.0
        %351 = vmatpush1.msra.mxu0 0.0
        %352 = vmatprep.subr.mxu0 0.0
        %353 = vmatpush1.msra.mxu0 0.0
        %354 = vmatprep.subr.mxu0 0.0
        %355 = vmatpush1.msra.mxu0 0.0
        %356 = vmatprep.subr.mxu0 0.0
        %357 = vmatpush1.msra.mxu0 0.0
        %358 = vmatprep.subr.mxu0 0.0
        %359 = vmatpush1.msra.mxu0 0.0
        %360 = vmatprep.subr.mxu0 0.0
        %361 = vmatpush1.msra.mxu0 0.0
        %362 = vmatprep.subr.mxu0 0.0
        %363 = vmatpush1.msra.mxu0 0.0
        %364 = vmatprep.subr.mxu0 0.0
        %365 = vmatpush1.msra.mxu0 0.0
        %366 = vmatprep.subr.mxu0 0.0
        %367 = vmatpush1.msra.mxu0 0.0
        %368 = vmatprep.subr.mxu0 0.0
        %369 = vmatpush1.msra.mxu0 0.0
        %370 = vmatprep.subr.mxu0 0.0
        %371 = vmatpush1.msra.mxu0 0.0
        %372 = vmatprep.subr.mxu0 0.0
        %373 = vmatpush1.msra.mxu0 0.0
        %374 = vmatprep.subr.mxu0 0.0
        %375 = vmatpush1.msra.mxu0 0.0
        %376 = vmatprep.subr.mxu0 0.0
        %377 = vmatpush1.msra.mxu0 0.0
        %378 = vmatprep.subr.mxu0 0.0
        %379 = vmatpush1.msra.mxu0 0.0
        %380 = vmatprep.subr.mxu0 0.0
        %381 = vmatpush1.msra.mxu0 0.0
        %382 = vmatprep.subr.mxu0 0.0
        %383 = vmatpush1.msra.mxu0 0.0
        %384 = vmatprep.subr.mxu0 0.0
        %385 = vmatpush1.msra.mxu0 0.0
        %386 = vmatprep.mubr.f32.mxu0 0.0
        %v387 = vand.u32 %v214, 4294901760
        %388 = vmatmul.mubr.f32.gmra.mrb[0].mxu0 %v387
        %v389 = vpop.f32.mrb[0].mxu0
        %v390 = vadd.f32 %v294, %v389
        %v391 = vpop.f32.mrb[0].mxu0
        %392 = vmatprep.mubr.f32.mxu0 0.0
        %v393 = vand.u32 %v217, 4294901760
        %394 = vmatmul.mubr.f32.gmra.mrb[0].mxu0 %v393
        %v395 = vpop.f32.mrb[0].mxu0
        %v396 = vadd.f32 %v304, %v395
        %v397 = vpop.f32.mrb[0].mxu0
        %398 = vdwg.mxu0
        %399 = vmatprep.subr.mxu0 0.0
        %v400 = vand.u32 %v209, 4294901760
        %v401 = vsub.f32 %v209, %v400
        %402 = vmatpush1.msra.mxu0 %v401
        %403 = vmatprep.subr.mxu0 0.0
        %v404 = vand.u32 %v210, 4294901760
        %v405 = vsub.f32 %v210, %v404
        %406 = vmatpush1.msra.mxu0 %v405
        %407 = vmatprep.subr.mxu0 0.0
        %v408 = vand.u32 %v211, 4294901760
        %v409 = vsub.f32 %v211, %v408
        %410 = vmatpush1.msra.mxu0 %v409
        %411 = vmatprep.subr.mxu0 0.0
        %412 = vmatpush1.msra.mxu0 0.0
        %413 = vmatprep.subr.mxu0 0.0
        %414 = vmatpush1.msra.mxu0 0.0
        %415 = vmatprep.subr.mxu0 0.0
        %416 = vmatpush1.msra.mxu0 0.0
        %417 = vmatprep.subr.mxu0 0.0
        %418 = vmatpush1.msra.mxu0 0.0
        %419 = vmatprep.subr.mxu0 0.0
        %420 = vmatpush1.msra.mxu0 0.0
        %421 = vmatprep.subr.mxu0 0.0
        %422 = vmatpush1.msra.mxu0 0.0
        %423 = vmatprep.subr.mxu0 0.0
        %424 = vmatpush1.msra.mxu0 0.0
        %425 = vmatprep.subr.mxu0 0.0
        %426 = vmatpush1.msra.mxu0 0.0
        %427 = vmatprep.subr.mxu0 0.0
        %428 = vmatpush1.msra.mxu0 0.0
        %429 = vmatprep.subr.mxu0 0.0
        %430 = vmatpush1.msra.mxu0 0.0
        %431 = vmatprep.subr.mxu0 0.0
        %432 = vmatpush1.msra.mxu0 0.0
        %433 = vmatprep.subr.mxu0 0.0
        %434 = vmatpush1.msra.mxu0 0.0
        %435 = vmatprep.subr.mxu0 0.0
        %436 = vmatpush1.msra.mxu0 0.0
        %437 = vmatprep.subr.mxu0 0.0
        %438 = vmatpush1.msra.mxu0 0.0
        %439 = vmatprep.subr.mxu0 0.0
        %440 = vmatpush1.msra.mxu0 0.0
        %441 = vmatprep.subr.mxu0 0.0
        %442 = vmatpush1.msra.mxu0 0.0
        %443 = vmatprep.subr.mxu0 0.0
        %444 = vmatpush1.msra.mxu0 0.0
        %445 = vmatprep.subr.mxu0 0.0
        %446 = vmatpush1.msra.mxu0 0.0
        %447 = vmatprep.subr.mxu0 0.0
        %448 = vmatpush1.msra.mxu0 0.0
        %449 = vmatprep.subr.mxu0 0.0
        %450 = vmatpush1.msra.mxu0 0.0
        %451 = vmatprep.subr.mxu0 0.0
        %452 = vmatpush1.msra.mxu0 0.0
        %453 = vmatprep.subr.mxu0 0.0
        %454 = vmatpush1.msra.mxu0 0.0
        %455 = vmatprep.subr.mxu0 0.0
        %456 = vmatpush1.msra.mxu0 0.0
        %457 = vmatprep.subr.mxu0 0.0
        %458 = vmatpush1.msra.mxu0 0.0
        %459 = vmatprep.subr.mxu0 0.0
        %460 = vmatpush1.msra.mxu0 0.0
        %461 = vmatprep.subr.mxu0 0.0
        %462 = vmatpush1.msra.mxu0 0.0
        %463 = vmatprep.subr.mxu0 0.0
        %464 = vmatpush1.msra.mxu0 0.0
        %465 = vmatprep.subr.mxu0 0.0
        %466 = vmatpush1.msra.mxu0 0.0
        %467 = vmatprep.subr.mxu0 0.0
        %468 = vmatpush1.msra.mxu0 0.0
        %469 = vmatprep.mubr.f32.mxu0 0.0
        %v470 = vand.u32 %v214, 4294901760
        %v471 = vsub.f32 %v214, %v470
        %472 = vmatmul.mubr.f32.gmra.mrb[0].mxu0 %v471
        %v473 = vpop.f32.mrb[0].mxu0
        %v474 = vadd.f32 %v390, %v473
        %v475 = vpop.f32.mrb[0].mxu0
        %476 = vmatprep.mubr.f32.mxu0 0.0
        %v477 = vand.u32 %v217, 4294901760
        %v478 = vsub.f32 %v217, %v477
        %479 = vmatmul.mubr.f32.gmra.mrb[0].mxu0 %v478
        %v480 = vpop.f32.mrb[0].mxu0
        %v481 = vadd.f32 %v396, %v480
        %v482 = vpop.f32.mrb[0].mxu0
        %483 = vdwg.mxu0
        %484 = vmatprep.subr.mxu0 0.0
        %v485 = vand.u32 %v209, 4294901760
        %486 = vmatpush1.msra.mxu0 %v485
        %487 = vmatprep.subr.mxu0 0.0
        %v488 = vand.u32 %v210, 4294901760
        %489 = vmatpush1.msra.mxu0 %v488
        %490 = vmatprep.subr.mxu0 0.0
        %v491 = vand.u32 %v211, 4294901760
        %492 = vmatpush1.msra.mxu0 %v491
        %493 = vmatprep.subr.mxu0 0.0
        %494 = vmatpush1.msra.mxu0 0.0
        %495 = vmatprep.subr.mxu0 0.0
        %496 = vmatpush1.msra.mxu0 0.0
        %497 = vmatprep.subr.mxu0 0.0
        %498 = vmatpush1.msra.mxu0 0.0
        %499 = vmatprep.subr.mxu0 0.0
        %500 = vmatpush1.msra.mxu0 0.0
        %501 = vmatprep.subr.mxu0 0.0
        %502 = vmatpush1.msra.mxu0 0.0
        %503 = vmatprep.subr.mxu0 0.0
        %504 = vmatpush1.msra.mxu0 0.0
        %505 = vmatprep.subr.mxu0 0.0
        %506 = vmatpush1.msra.mxu0 0.0
        %507 = vmatprep.subr.mxu0 0.0
        %508 = vmatpush1.msra.mxu0 0.0
        %509 = vmatprep.subr.mxu0 0.0
        %510 = vmatpush1.msra.mxu0 0.0
        %511 = vmatprep.subr.mxu0 0.0
        %512 = vmatpush1.msra.mxu0 0.0
        %513 = vmatprep.subr.mxu0 0.0
        %514 = vmatpush1.msra.mxu0 0.0
        %515 = vmatprep.subr.mxu0 0.0
        %516 = vmatpush1.msra.mxu0 0.0
        %517 = vmatprep.subr.mxu0 0.0
        %518 = vmatpush1.msra.mxu0 0.0
        %519 = vmatprep.subr.mxu0 0.0
        %520 = vmatpush1.msra.mxu0 0.0
        %521 = vmatprep.subr.mxu0 0.0
        %522 = vmatpush1.msra.mxu0 0.0
        %523 = vmatprep.subr.mxu0 0.0
        %524 = vmatpush1.msra.mxu0 0.0
        %525 = vmatprep.subr.mxu0 0.0
        %526 = vmatpush1.msra.mxu0 0.0
        %527 = vmatprep.subr.mxu0 0.0
        %528 = vmatpush1.msra.mxu0 0.0
        %529 = vmatprep.subr.mxu0 0.0
        %530 = vmatpush1.msra.mxu0 0.0
        %531 = vmatprep.subr.mxu0 0.0
        %532 = vmatpush1.msra.mxu0 0.0
        %533 = vmatprep.subr.mxu0 0.0
        %534 = vmatpush1.msra.mxu0 0.0
        %535 = vmatprep.subr.mxu0 0.0
        %536 = vmatpush1.msra.mxu0 0.0
        %537 = vmatprep.subr.mxu0 0.0
        %538 = vmatpush1.msra.mxu0 0.0
        %539 = vmatprep.subr.mxu0 0.0
        %540 = vmatpush1.msra.mxu0 0.0
        %541 = vmatprep.subr.mxu0 0.0
        %542 = vmatpush1.msra.mxu0 0.0
        %543 = vmatprep.subr.mxu0 0.0
        %544 = vmatpush1.msra.mxu0 0.0
        %545 = vmatprep.subr.mxu0 0.0
        %546 = vmatpush1.msra.mxu0 0.0
        %547 = vmatprep.subr.mxu0 0.0
        %548 = vmatpush1.msra.mxu0 0.0
        %549 = vmatprep.subr.mxu0 0.0
        %550 = vmatpush1.msra.mxu0 0.0
        %551 = vmatprep.mubr.f32.mxu0 0.0
        %v552 = vand.u32 %v214, 4294901760
        %v553 = vsub.f32 %v214, %v552
        %v554 = vand.u32 %v553, 4294901760
        %555 = vmatmul.mubr.f32.gmra.mrb[0].mxu0 %v554
        %v556 = vpop.f32.mrb[0].mxu0
        %v557 = vadd.f32 %v474, %v556
        %v558 = vpop.f32.mrb[0].mxu0
        %559 = vmatprep.mubr.f32.mxu0 0.0
        %v560 = vand.u32 %v217, 4294901760
        %v561 = vsub.f32 %v217, %v560
        %v562 = vand.u32 %v561, 4294901760
        %563 = vmatmul.mubr.f32.gmra.mrb[0].mxu0 %v562
        %v564 = vpop.f32.mrb[0].mxu0
        %v565 = vadd.f32 %v481, %v564
        %v566 = vpop.f32.mrb[0].mxu0
        %567 = vdwg.mxu0
        %568 = vmatprep.subr.mxu0 0.0
        %v569 = vand.u32 %v209, 4294901760
        %v570 = vsub.f32 %v209, %v569
        %v571 = vand.u32 %v570, 4294901760
        %572 = vmatpush1.msra.mxu0 %v571
        %573 = vmatprep.subr.mxu0 0.0
        %v574 = vand.u32 %v210, 4294901760
        %v575 = vsub.f32 %v210, %v574
        %v576 = vand.u32 %v575, 4294901760
        %577 = vmatpush1.msra.mxu0 %v576
        %578 = vmatprep.subr.mxu0 0.0
        %v579 = vand.u32 %v211, 4294901760
        %v580 = vsub.f32 %v211, %v579
        %v581 = vand.u32 %v580, 4294901760
        %582 = vmatpush1.msra.mxu0 %v581
        %583 = vmatprep.subr.mxu0 0.0
        %584 = vmatpush1.msra.mxu0 0.0
        %585 = vmatprep.subr.mxu0 0.0
        %586 = vmatpush1.msra.mxu0 0.0
        %587 = vmatprep.subr.mxu0 0.0
        %588 = vmatpush1.msra.mxu0 0.0
        %589 = vmatprep.subr.mxu0 0.0
        %590 = vmatpush1.msra.mxu0 0.0
        %591 = vmatprep.subr.mxu0 0.0
        %592 = vmatpush1.msra.mxu0 0.0
        %593 = vmatprep.subr.mxu0 0.0
        %594 = vmatpush1.msra.mxu0 0.0
        %595 = vmatprep.subr.mxu0 0.0
        %596 = vmatpush1.msra.mxu0 0.0
        %597 = vmatprep.subr.mxu0 0.0
        %598 = vmatpush1.msra.mxu0 0.0
        %599 = vmatprep.subr.mxu0 0.0
        %600 = vmatpush1.msra.mxu0 0.0
        %601 = vmatprep.subr.mxu0 0.0
        %602 = vmatpush1.msra.mxu0 0.0
        %603 = vmatprep.subr.mxu0 0.0
        %604 = vmatpush1.msra.mxu0 0.0
        %605 = vmatprep.subr.mxu0 0.0
        %606 = vmatpush1.msra.mxu0 0.0
        %607 = vmatprep.subr.mxu0 0.0
        %608 = vmatpush1.msra.mxu0 0.0
        %609 = vmatprep.subr.mxu0 0.0
        %610 = vmatpush1.msra.mxu0 0.0
        %611 = vmatprep.subr.mxu0 0.0
        %612 = vmatpush1.msra.mxu0 0.0
        %613 = vmatprep.subr.mxu0 0.0
        %614 = vmatpush1.msra.mxu0 0.0
        %615 = vmatprep.subr.mxu0 0.0
        %616 = vmatpush1.msra.mxu0 0.0
        %617 = vmatprep.subr.mxu0 0.0
        %618 = vmatpush1.msra.mxu0 0.0
        %619 = vmatprep.subr.mxu0 0.0
        %620 = vmatpush1.msra.mxu0 0.0
        %621 = vmatprep.subr.mxu0 0.0
        %622 = vmatpush1.msra.mxu0 0.0
        %623 = vmatprep.subr.mxu0 0.0
        %624 = vmatpush1.msra.mxu0 0.0
        %625 = vmatprep.subr.mxu0 0.0
        %626 = vmatpush1.msra.mxu0 0.0
        %627 = vmatprep.subr.mxu0 0.0
        %628 = vmatpush1.msra.mxu0 0.0
        %629 = vmatprep.subr.mxu0 0.0
        %630 = vmatpush1.msra.mxu0 0.0
        %631 = vmatprep.subr.mxu0 0.0
        %632 = vmatpush1.msra.mxu0 0.0
        %633 = vmatprep.subr.mxu0 0.0
        %634 = vmatpush1.msra.mxu0 0.0
        %635 = vmatprep.subr.mxu0 0.0
        %636 = vmatpush1.msra.mxu0 0.0
        %637 = vmatprep.subr.mxu0 0.0
        %638 = vmatpush1.msra.mxu0 0.0
        %639 = vmatprep.subr.mxu0 0.0
        %640 = vmatpush1.msra.mxu0 0.0
        %641 = vmatprep.mubr.f32.mxu0 0.0
        %v642 = vand.u32 %v214, 4294901760
        %643 = vmatmul.mubr.f32.gmra.mrb[0].mxu0 %v642
        %v644 = vpop.f32.mrb[0].mxu0
        %v645 = vadd.f32 %v557, %v644
        %v646 = vpop.f32.mrb[0].mxu0
        %647 = vmatprep.mubr.f32.mxu0 0.0
        %v648 = vand.u32 %v217, 4294901760
        %649 = vmatmul.mubr.f32.gmra.mrb[0].mxu0 %v648
        %v650 = vpop.f32.mrb[0].mxu0
        %v651 = vadd.f32 %v565, %v650
        %v652 = vpop.f32.mrb[0].mxu0
        %653 = vdwg.mxu0
        %654 = vmatprep.subr.mxu0 0.0
        %v655 = vand.u32 %v209, 4294901760
        %656 = vmatpush1.msra.mxu0 %v655
        %657 = vmatprep.subr.mxu0 0.0
        %v658 = vand.u32 %v210, 4294901760
        %659 = vmatpush1.msra.mxu0 %v658
        %660 = vmatprep.subr.mxu0 0.0
        %v661 = vand.u32 %v211, 4294901760
        %662 = vmatpush1.msra.mxu0 %v661
        %663 = vmatprep.subr.mxu0 0.0
        %664 = vmatpush1.msra.mxu0 0.0
        %665 = vmatprep.subr.mxu0 0.0
        %666 = vmatpush1.msra.mxu0 0.0
        %667 = vmatprep.subr.mxu0 0.0
        %668 = vmatpush1.msra.mxu0 0.0
        %669 = vmatprep.subr.mxu0 0.0
        %670 = vmatpush1.msra.mxu0 0.0
        %671 = vmatprep.subr.mxu0 0.0
        %672 = vmatpush1.msra.mxu0 0.0
        %673 = vmatprep.subr.mxu0 0.0
        %674 = vmatpush1.msra.mxu0 0.0
        %675 = vmatprep.subr.mxu0 0.0
        %676 = vmatpush1.msra.mxu0 0.0
        %677 = vmatprep.subr.mxu0 0.0
        %678 = vmatpush1.msra.mxu0 0.0
        %679 = vmatprep.subr.mxu0 0.0
        %680 = vmatpush1.msra.mxu0 0.0
        %681 = vmatprep.subr.mxu0 0.0
        %682 = vmatpush1.msra.mxu0 0.0
        %683 = vmatprep.subr.mxu0 0.0
        %684 = vmatpush1.msra.mxu0 0.0
        %685 = vmatprep.subr.mxu0 0.0
        %686 = vmatpush1.msra.mxu0 0.0
        %687 = vmatprep.subr.mxu0 0.0
        %688 = vmatpush1.msra.mxu0 0.0
        %689 = vmatprep.subr.mxu0 0.0
        %690 = vmatpush1.msra.mxu0 0.0
        %691 = vmatprep.subr.mxu0 0.0
        %692 = vmatpush1.msra.mxu0 0.0
        %693 = vmatprep.subr.mxu0 0.0
        %694 = vmatpush1.msra.mxu0 0.0
        %695 = vmatprep.subr.mxu0 0.0
        %696 = vmatpush1.msra.mxu0 0.0
        %697 = vmatprep.subr.mxu0 0.0
        %698 = vmatpush1.msra.mxu0 0.0
        %699 = vmatprep.subr.mxu0 0.0
        %700 = vmatpush1.msra.mxu0 0.0
        %701 = vmatprep.subr.mxu0 0.0
        %702 = vmatpush1.msra.mxu0 0.0
        %703 = vmatprep.subr.mxu0 0.0
        %704 = vmatpush1.msra.mxu0 0.0
        %705 = vmatprep.subr.mxu0 0.0
        %706 = vmatpush1.msra.mxu0 0.0
        %707 = vmatprep.subr.mxu0 0.0
        %708 = vmatpush1.msra.mxu0 0.0
        %709 = vmatprep.subr.mxu0 0.0
        %710 = vmatpush1.msra.mxu0 0.0
        %711 = vmatprep.subr.mxu0 0.0
        %712 = vmatpush1.msra.mxu0 0.0
        %713 = vmatprep.subr.mxu0 0.0
        %714 = vmatpush1.msra.mxu0 0.0
        %715 = vmatprep.subr.mxu0 0.0
        %716 = vmatpush1.msra.mxu0 0.0
        %717 = vmatprep.subr.mxu0 0.0
        %718 = vmatpush1.msra.mxu0 0.0
        %719 = vmatprep.subr.mxu0 0.0
        %720 = vmatpush1.msra.mxu0 0.0
        %721 = vmatprep.mubr.f32.mxu0 0.0
        %v722 = vand.u32 %v214, 4294901760
        %723 = vmatmul.mubr.f32.gmra.mrb[0].mxu0 %v722
        %v724 = vpop.f32.mrb[0].mxu0
        %v725 = vadd.f32 %v645, %v724
        %v726 = vpop.f32.mrb[0].mxu0
        %727 = vmatprep.mubr.f32.mxu0 0.0
        %v728 = vand.u32 %v217, 4294901760
        %729 = vmatmul.mubr.f32.gmra.mrb[0].mxu0 %v728
        %v730 = vpop.f32.mrb[0].mxu0
        %v731 = vadd.f32 %v651, %v730
        %v732 = vpop.f32.mrb[0].mxu0
        %733 = vdwg.mxu0
        %734 = vst [vmem:[%s163] sm:$0xff] %v725
        %735 = vst [vmem:[%s163 + $0x8] sm:$0xff] %v731
        %s736 = sand.u32 %s90, 1
        %s737 = scalar_lea.sflag [#allocation3], %s736
        %s738 = sand.u32 %s90, 1
        %s739 = smul.addr %s738, 16
        %s740 = scalar_lea.vmem [#allocation2], %s739
        // Predicated region
        $region29: #{tpu_custom_call.1} parent=27 // pred_check
          %p741 = pneg %p100
        $region30: #{tpu_custom_call.1} parent=27 // pred_check_branch
          %743 = sbr.rel (%p741) target = $region32
        $region31: #{tpu_custom_call.1} parent=27 // pred_region
          %s745 = ssub.s32 256, 256
          %746 = vsyncadd %s737, %s745
          %s747 = smul.addr %s20, 2
          %s748 = sadd.s32 %s21, %s747
          %s749 = smul.addr %s748, 128
          %s750 = scalar_lea.hbm %s2, %s749
          %s751 = sshll.u32 %s740, 4
          %s752 = int_to_ptr.vmem [resolvable:$true] %s751
          %757 = dma.vmem_to_hbm [thread:$0]  %s752, 256, %s750, %s737, 128, 128, 8
        $region32: #{tpu_custom_call.1} parent=27 // pred_fallthru
          _
      $region28: #{tpu_custom_call.1} parent=5 // pred_fallthru
        _
      %p758 = scmp.le.s32.totalorder 2, %s11
      // Predicated region
      $region33: #{tpu_custom_call.1} parent=5 // pred_check
        %p759 = pneg %p758
      $region34: #{tpu_custom_call.1} parent=5 // pred_check_branch
        %761 = sbr.rel (%p759) target = $region36
      $region35: #{tpu_custom_call.1} parent=5 // pred_region
        %s762 = ssub.s32 %s11, 2
        // Predicated region
        $region37: #{tpu_custom_call.1} parent=35 // pred_check
          %p763 = pneg %p106
        $region38: #{tpu_custom_call.1} parent=35 // pred_check_branch
          %765 = sbr.rel (%p763) target = $region40
        $region39: #{tpu_custom_call.1} parent=35 // pred_region
          %s766 = sand.u32 %s91, 1
          %s767 = scalar_lea.sflag [#allocation3], %s766
          %s768 = sand.u32 %s91, 1
          %s769 = smul.addr %s768, 16
          %s770 = scalar_lea.vmem [#allocation2], %s769
          %771 = dma.done %s767, 256
        $region40: #{tpu_custom_call.1} parent=35 // pred_fallthru
          _
      $region36: #{tpu_custom_call.1} parent=5 // pred_fallthru
        _
    $region6: #{tpu_custom_call.1} parent=1 // loop_footer
      %s15 = sadd.s32 1, %s11
    $region7: #{tpu_custom_call.1} parent=1 // loop_footer_branch
      %10 = sbr.rel target = $region3
    $region8: #{tpu_custom_call.1} parent=1 // loop_exit
      _
    %772 = vsyncpa [#allocation3], 1
    %s773 = scalar_lea.sflag [#allocation3], 1
    %774 = vsyncpa %s773, 1

</llo_original>
